<compile_context>
chip_gen: v5e
topology: v5e:2x2
jax: 0.10.0
libtpu: 0.0.40
codegen_flags: <defaults>
</compile_context>

<pallas_src>
from functools import partial

import numpy as np
import jax
import jax.numpy as jnp
from jax.experimental import pallas as pl
from jax.experimental.pallas import tpu as pltpu


_SUBLANE = 8
_LANE = 128
_TC_MAX = 256          # timesteps folded into one grid step


def _round_up(x, m):
    return ((x + m - 1) // m) * m


# ------------------------------ fused kernel -------------------------------

def _make_fused_kernel(num_layers, num_hidden, t_total, t_padded):
    """Fused kernel: all LSTM layers + output Linear, Tc timesteps per call."""
    L, H = num_layers, num_hidden
    H4 = 4 * H
    need_mask = (t_padded != t_total)

    def kernel(xs_ref, h0_ref, c0_ref, w_ih0_ref, w_hh0_ref, w_cat_ref,
               b_all_ref, w_out_ref, b_out_ref,
               out_ref, h_out_ref, c_out_ref,
               h_sc, c_sc, xp_sc, htop_sc, xh_sc):
        chunk = pl.program_id(0)
        Tc, B, NI = xs_ref.shape
        O_pad = out_ref.shape[2]

        @pl.when(chunk == 0)
        def _init():
            h_sc[...] = h0_ref[...]
            c_sc[...] = c0_ref[...]

        # Gate-activation constants (hoisted out of the step loop).
        # torch gate order [i, f, g, o]; g lanes use tanh(x) = 2*sigmoid(2x)-1
        # so a single full-width sigmoid covers all four gates.
        lane = jax.lax.broadcasted_iota(jnp.int32, (1, H4), 1)
        g_lane = (lane >= 2 * H) & (lane < 3 * H)
        pre_scale = jnp.where(g_lane, 2.0, 1.0)    # x -> 2x on g lanes
        post_scale = pre_scale                     # y -> 2y on g lanes
        post_shift = jnp.where(g_lane, -1.0, 0.0)  # y -> y - 1 on g lanes

        def gate_act(gates):
            y = jax.nn.sigmoid(gates * pre_scale)
            return y * post_scale + post_shift

        # Chunk-entry batched layer-0 input projection (x-path has no
        # recurrence): one (Tc*B, NI) @ (NI, 4H) matmul, bias folded in.
        x_flat = xs_ref[...].reshape(Tc * B, NI)
        xp = jnp.dot(x_flat, w_ih0_ref[...],
                     preferred_element_type=jnp.float32) + b_all_ref[0]
        xp_sc[...] = xp.reshape(Tc, B, H4)

        if need_mask:
            # Last chunk contains padded steps; keep their top-h deterministic
            # so the (discarded) projected rows are well defined.
            @pl.when(chunk == pl.num_programs(0) - 1)
            def _zero_htop():
                htop_sc[...] = jnp.zeros_like(htop_sc)

        def lstm_cell(gates, l):
            act = gate_act(gates)
            i = act[:, 0 * H:1 * H]
            f = act[:, 1 * H:2 * H]
            g = act[:, 2 * H:3 * H]
            o = act[:, 3 * H:4 * H]
            c_new = f * c_sc[l] + i * g
            h_new = o * jnp.tanh(c_new)
            h_sc[l] = h_new
            c_sc[l] = c_new
            return h_new

        def do_step(s):
            # Layer 0: x-part precomputed; only h @ W_hh0 on the serial path.
            gates = xp_sc[s] + jnp.dot(h_sc[0], w_hh0_ref[...],
                                       preferred_element_type=jnp.float32)
            layer_in = lstm_cell(gates, 0)
            # Layers >= 1: fused [h_below, h_prev] @ [W_ih; W_hh] matmul.
            for l in range(1, L):
                xh_sc[:, 0:H] = layer_in
                xh_sc[:, H:2 * H] = h_sc[l]
                gates = (jnp.dot(xh_sc[...], w_cat_ref[l - 1],
                                 preferred_element_type=jnp.float32)
                         + b_all_ref[l])
                layer_in = lstm_cell(gates, l)
            htop_sc[s] = layer_in

        def step(s, carry):
            if need_mask:
                @pl.when(chunk * Tc + s < t_total)
                def _():
                    do_step(s)
            else:
                do_step(s)
            return carry

        unroll = 4 if Tc >= 4 else True
        jax.lax.fori_loop(0, Tc, step, 0, unroll=unroll)

        # Batched output projection for the whole chunk; one lane-dense store.
        h_flat = htop_sc[...].reshape(Tc * B, H)
        proj = (jnp.dot(h_flat, w_out_ref[...],
                        preferred_element_type=jnp.float32)
                + b_out_ref[...])
        out_ref[...] = proj.reshape(Tc, B, O_pad)

        @pl.when(chunk == pl.num_programs(0) - 1)
        def _finalize():
            h_out_ref[...] = h_sc[...]
            c_out_ref[...] = c_sc[...]

    return kernel


@partial(jax.jit, static_argnames=("num_outputs", "chunk"))
def _fused_lstm_seq(xs, h0, c0, w_ih0, w_hh0, w_cat, b_all, w_out_p, b_out_p,
                    *, num_outputs, chunk=None):
    """Run the whole sequence in one fused Pallas kernel.

    xs: (T, B, num_inputs); h0/c0: (L, B, H).
    Returns (outs (T, B, num_outputs), hN (L, B, H), cN (L, B, H)).
    """
    T, B, NI = xs.shape
    L, _, H = h0.shape
    O_pad = w_out_p.shape[1]

    B_pad = max(_SUBLANE, _round_up(B, _SUBLANE))
    Tc = chunk if chunk is not None else min(_TC_MAX, T)
    Tc = max(1, min(Tc, T))
    n_chunks = pl.cdiv(T, Tc)
    T_pad = n_chunks * Tc

    xs_p = jnp.pad(xs, ((0, T_pad - T), (0, B_pad - B), (0, 0)))
    h0_p = jnp.pad(h0, ((0, 0), (0, B_pad - B), (0, 0)))
    c0_p = jnp.pad(c0, ((0, 0), (0, B_pad - B), (0, 0)))

    const3 = lambda c: (0, 0, 0)   # weights/state resident across the grid
    const2 = lambda c: (0, 0)
    step3 = lambda c: (c, 0, 0)    # per-chunk block along time

    in_specs = [
        pl.BlockSpec((Tc, B_pad, NI), step3),       # xs chunk
        pl.BlockSpec((L, B_pad, H), const3),        # h0
        pl.BlockSpec((L, B_pad, H), const3),        # c0
        pl.BlockSpec(w_ih0.shape, const2),          # (NI, 4H)
        pl.BlockSpec(w_hh0.shape, const2),          # (H, 4H)
        pl.BlockSpec(w_cat.shape, const3),          # (max(L-1,1), 2H, 4H)
        pl.BlockSpec(b_all.shape, const3),          # (L, 1, 4H)
        pl.BlockSpec(w_out_p.shape, const2),        # (H, O_pad)
        pl.BlockSpec(b_out_p.shape, const2),        # (1, O_pad)
    ]
    out_specs = (
        pl.BlockSpec((Tc, B_pad, O_pad), step3),    # per-chunk projection slab
        pl.BlockSpec((L, B_pad, H), const3),        # final h
        pl.BlockSpec((L, B_pad, H), const3),        # final c
    )
    out_shape = (
        jax.ShapeDtypeStruct((T_pad, B_pad, O_pad), jnp.float32),
        jax.ShapeDtypeStruct((L, B_pad, H), jnp.float32),
        jax.ShapeDtypeStruct((L, B_pad, H), jnp.float32),
    )
    scratch_shapes = [
        pltpu.VMEM((L, B_pad, H), jnp.float32),        # recurrent h
        pltpu.VMEM((L, B_pad, H), jnp.float32),        # recurrent c
        pltpu.VMEM((Tc, B_pad, 4 * H), jnp.float32),   # layer-0 x projection
        pltpu.VMEM((Tc, B_pad, H), jnp.float32),       # top-layer h per step
        pltpu.VMEM((B_pad, 2 * H), jnp.float32),       # [h_below, h_prev] buf
    ]

    outs_p, hN_p, cN_p = pl.pallas_call(
        _make_fused_kernel(L, H, T, T_pad),
        grid=(n_chunks,),
        in_specs=in_specs,
        out_specs=out_specs,
        out_shape=out_shape,
        scratch_shapes=scratch_shapes,
        compiler_params=pltpu.CompilerParams(
            dimension_semantics=("arbitrary",)),       # recurrent over time
    )(xs_p, h0_p, c0_p, w_ih0, w_hh0, w_cat, b_all, w_out_p, b_out_p)

    return (outs_p[:T, :B, :num_outputs], hN_p[:, :B, :], cN_p[:, :B, :])


# -------------------------- Model (params + glue) --------------------------

class LSTMBaselinePallas:
    """JAX/Pallas port of the PyTorch LSTMBaseline forward pass."""

    def __init__(self, num_inputs, num_hidden, num_outputs, num_layers, key):
        self.num_inputs = num_inputs
        self.num_hidden = num_hidden
        self.num_outputs = num_outputs
        self.num_layers = num_layers

        stdev = 5.0 / np.sqrt(num_inputs + num_hidden)  # reset_parameters()
        keys = jax.random.split(key, 2 * num_layers + 4)

        # LSTM weights (transposed layout), biases = 0 (per reset_parameters).
        w_ih, w_hh, b = [], [], []
        for l in range(num_layers):
            in_dim = num_inputs if l == 0 else num_hidden
            w_ih.append(jax.random.uniform(
                keys[2 * l], (in_dim, 4 * num_hidden),
                minval=-stdev, maxval=stdev, dtype=jnp.float32))
            w_hh.append(jax.random.uniform(
                keys[2 * l + 1], (num_hidden, 4 * num_hidden),
                minval=-stdev, maxval=stdev, dtype=jnp.float32))
            b.append(jnp.zeros((1, 4 * num_hidden), jnp.float32))
        self.w_ih = tuple(w_ih)   # layer l: (in_dim_l, 4H)
        self.w_hh = tuple(w_hh)   # layer l: (H, 4H)
        self.b = tuple(b)         # layer l: (1, 4H) == b_ih + b_hh

        # Output Linear (torch default-style uniform init, deterministic here).
        bound = 1.0 / np.sqrt(num_hidden)
        self.w_out = jax.random.uniform(
            keys[2 * num_layers], (num_hidden, num_outputs),
            minval=-bound, maxval=bound, dtype=jnp.float32)
        self.b_out = jax.random.uniform(
            keys[2 * num_layers + 1], (1, num_outputs),
            minval=-bound, maxval=bound, dtype=jnp.float32)

        # Learnable initial-state biases: randn * 0.05, shape (L, 1, H).
        self.lstm_h_bias = 0.05 * jax.random.normal(
            keys[2 * num_layers + 2], (num_layers, 1, num_hidden), jnp.float32)
        self.lstm_c_bias = 0.05 * jax.random.normal(
            keys[2 * num_layers + 3], (num_layers, 1, num_hidden), jnp.float32)

        # ---- packed / padded operands for the fused kernel ----
        H, O = num_hidden, num_outputs
        O_pad = max(_LANE, _round_up(O, _LANE))
        self._w_ih0 = self.w_ih[0]                       # (NI, 4H)
        self._w_hh0 = self.w_hh[0]                       # (H, 4H)
        if num_layers > 1:
            self._w_cat = jnp.stack(                     # (L-1, 2H, 4H)
                [jnp.concatenate([self.w_ih[l], self.w_hh[l]], axis=0)
                 for l in range(1, num_layers)], axis=0)
        else:
            self._w_cat = jnp.zeros((1, 2 * H, 4 * H), jnp.float32)  # unused
        self._b_all = jnp.stack(self.b, axis=0)          # (L, 1, 4H)
        self._w_out_p = jnp.pad(self.w_out, ((0, 0), (0, O_pad - O)))
        self._b_out_p = jnp.pad(self.b_out, ((0, 0), (0, O_pad - O)))

        self.previous_state = None

    def create_new_state(self, batch_size):
        h = jnp.tile(self.lstm_h_bias, (1, batch_size, 1))
        c = jnp.tile(self.lstm_c_bias, (1, batch_size, 1))
        return (h, c)

    def init_sequence(self, batch_size):
        self.previous_state = self.create_new_state(batch_size)

    def _run(self, xs, chunk=None):
        h0, c0 = self.previous_state
        outs, hN, cN = _fused_lstm_seq(
            xs, h0, c0, self._w_ih0, self._w_hh0, self._w_cat, self._b_all,
            self._w_out_p, self._b_out_p,
            num_outputs=self.num_outputs, chunk=chunk)
        self.previous_state = (hN, cN)
        return outs

    def forward(self, x):
        """x: (batch, num_inputs) -> (out: (batch, num_outputs), new_state).

        Single-token API parity with the PyTorch module; prefer
        forward_sequence for throughput (weights stay VMEM-resident per chunk).
        """
        outs = self._run(x[None])
        return outs[0], self.previous_state

    def forward_sequence(self, xs, chunk=None):
        """xs: (T, batch, num_inputs) -> (outs: (T, batch, num_outputs), state).

        Whole sequence in ONE kernel launch; the time axis is chunked inside
        the kernel and the recurrent state never leaves VMEM between steps.
        """
        outs = self._run(xs, chunk=chunk)
        return outs, self.previous_state


# ----------------------------- reference check -----------------------------

def _reference_step(model, x, state):
    """Pure-JAX reference of one timestep (for correctness sanity check)."""
    h_prev, c_prev = state
    H = model.num_hidden
    layer_in = x
    hs, cs = [], []
    for l in range(model.num_layers):
        gates = layer_in @ model.w_ih[l] + h_prev[l] @ model.w_hh[l] + model.b[l]
        i = jax.nn.sigmoid(gates[:, 0 * H:1 * H])
        f = jax.nn.sigmoid(gates[:, 1 * H:2 * H])
        g = jnp.tanh(gates[:, 2 * H:3 * H])
        o = jax.nn.sigmoid(gates[:, 3 * H:4 * H])
        c_l = f * c_prev[l] + i * g
        h_l = o * jnp.tanh(c_l)
        hs.append(h_l)
        cs.append(c_l)
        layer_in = h_l
    out = layer_in @ model.w_out + model.b_out
    return out, (jnp.stack(hs, 0), jnp.stack(cs, 0))


def _reference_sequence(model, xs, state):
    outs = []
    for t in range(xs.shape[0]):
        o_t, state = _reference_step(model, xs[t], state)
        outs.append(o_t)
    return jnp.stack(outs, axis=0), state


if __name__ == "__main__":
    num_inputs, num_hidden, num_outputs, num_layers = 16, 32, 8, 2
    batch = 2

    key = jax.random.PRNGKey(0)
    k_params, k_x, k_xs, k_xs2 = jax.random.split(key, 4)

    model = LSTMBaselinePallas(num_inputs, num_hidden, num_outputs,
                               num_layers, k_params)

    # ---- single-step forward (matches PyTorch forward semantics) ----
    model.init_sequence(batch)
    init_state = model.previous_state
    x = jax.random.normal(k_x, (batch, num_inputs), dtype=jnp.float32)

    out, (h_state, c_state) = model.forward(x)
    out = jax.block_until_ready(out)
    h_state = jax.block_until_ready(h_state)
    c_state = jax.block_until_ready(c_state)

    ref_out, (ref_h, ref_c) = _reference_step(model, x, init_state)
    np.testing.assert_allclose(np.asarray(out), np.asarray(ref_out),
                               rtol=1e-5, atol=1e-5)
    np.testing.assert_allclose(np.asarray(h_state), np.asarray(ref_h),
                               rtol=1e-5, atol=1e-5)
    np.testing.assert_allclose(np.asarray(c_state), np.asarray(ref_c),
                               rtol=1e-5, atol=1e-5)
    assert out.shape == (batch, num_outputs)
    assert h_state.shape == (num_layers, batch, num_hidden)
    assert c_state.shape == (num_layers, batch, num_hidden)

    # ---- fused multi-timestep path (single chunk, T divides Tc) ----
    T = 6
    xs = jax.random.normal(k_xs, (T, batch, num_inputs), dtype=jnp.float32)
    model.init_sequence(batch)
    seq_init = model.previous_state

    outs, (h_seq, c_seq) = model.forward_sequence(xs)
    outs = jax.block_until_ready(outs)
    h_seq = jax.block_until_ready(h_seq)
    c_seq = jax.block_until_ready(c_seq)

    ref_outs, ref_state = _reference_sequence(model, xs, seq_init)
    np.testing.assert_allclose(np.asarray(outs), np.asarray(ref_outs),
                               rtol=1e-5, atol=1e-5)
    np.testing.assert_allclose(np.asarray(h_seq), np.asarray(ref_state[0]),
                               rtol=1e-5, atol=1e-5)
    np.testing.assert_allclose(np.asarray(c_seq), np.asarray(ref_state[1]),
                               rtol=1e-5, atol=1e-5)
    assert outs.shape == (T, batch, num_outputs)

    # ---- chunked path with a partial last chunk (masked padded steps) ----
    T2, chunk = 7, 4
    xs2 = jax.random.normal(k_xs2, (T2, batch, num_inputs), dtype=jnp.float32)
    model.init_sequence(batch)
    seq_init2 = model.previous_state

    outs2, (h2, c2) = model.forward_sequence(xs2, chunk=chunk)
    outs2 = jax.block_until_ready(outs2)
    h2 = jax.block_until_ready(h2)
    c2 = jax.block_until_ready(c2)

    ref_outs2, ref_state2 = _reference_sequence(model, xs2, seq_init2)
    np.testing.assert_allclose(np.asarray(outs2), np.asarray(ref_outs2),
                               rtol=1e-5, atol=1e-5)
    np.testing.assert_allclose(np.asarray(h2), np.asarray(ref_state2[0]),
                               rtol=1e-5, atol=1e-5)
    np.testing.assert_allclose(np.asarray(c2), np.asarray(ref_state2[1]),
                               rtol=1e-5, atol=1e-5)
    assert outs2.shape == (T2, batch, num_outputs)

    print("KERNEL_OK")
</pallas_src>

<mosaic_0001>
module attributes {stable_mosaic.version = 11 : i64} {
  func.func @kernel(%arg0: i32, %arg1: memref<1x8x16xf32, #tpu.memory_space<vmem>>, %arg2: memref<2x8x32xf32, #tpu.memory_space<vmem>>, %arg3: memref<2x8x32xf32, #tpu.memory_space<vmem>>, %arg4: memref<16x128xf32, #tpu.memory_space<vmem>>, %arg5: memref<32x128xf32, #tpu.memory_space<vmem>>, %arg6: memref<1x64x128xf32, #tpu.memory_space<vmem>>, %arg7: memref<2x1x128xf32, #tpu.memory_space<vmem>>, %arg8: memref<32x128xf32, #tpu.memory_space<vmem>>, %arg9: memref<1x128xf32, #tpu.memory_space<vmem>>, %arg10: memref<1x8x128xf32, #tpu.memory_space<vmem>>, %arg11: memref<2x8x32xf32, #tpu.memory_space<vmem>>, %arg12: memref<2x8x32xf32, #tpu.memory_space<vmem>>, %arg13: memref<2x8x32xf32, #tpu.memory_space<vmem>>, %arg14: memref<2x8x32xf32, #tpu.memory_space<vmem>>, %arg15: memref<1x8x128xf32, #tpu.memory_space<vmem>>, %arg16: memref<1x8x32xf32, #tpu.memory_space<vmem>>, %arg17: memref<8x64xf32, #tpu.memory_space<vmem>>) attributes {dimension_semantics = [#tpu.dimension_semantics<arbitrary>], iteration_bounds = array<i64: 1>, scalar_prefetch = 0 : i64, scratch_operands = 5 : i64, tpu.core_type = #tpu.core_type<tc>, window_params = [{transform_indices = @transform_0, window_bounds = array<i64: 1, 8, 16>}, {pipeline_mode = #tpu.pipeline_mode<synchronous>, transform_indices = @transform_1, window_bounds = array<i64: 2, 8, 32>}, {pipeline_mode = #tpu.pipeline_mode<synchronous>, transform_indices = @transform_2, window_bounds = array<i64: 2, 8, 32>}, {pipeline_mode = #tpu.pipeline_mode<synchronous>, transform_indices = @transform_3, window_bounds = array<i64: 16, 128>}, {pipeline_mode = #tpu.pipeline_mode<synchronous>, transform_indices = @transform_4, window_bounds = array<i64: 32, 128>}, {pipeline_mode = #tpu.pipeline_mode<synchronous>, transform_indices = @transform_5, window_bounds = array<i64: 1, 64, 128>}, {pipeline_mode = #tpu.pipeline_mode<synchronous>, transform_indices = @transform_6, window_bounds = array<i64: 2, 1, 128>}, {pipeline_mode = #tpu.pipeline_mode<synchronous>, transform_indices = @transform_7, window_bounds = array<i64: 32, 128>}, {pipeline_mode = #tpu.pipeline_mode<synchronous>, transform_indices = @transform_8, window_bounds = array<i64: 1, 128>}, {transform_indices = @transform_9, window_bounds = array<i64: 1, 8, 128>}, {pipeline_mode = #tpu.pipeline_mode<synchronous>, transform_indices = @transform_10, window_bounds = array<i64: 2, 8, 32>}, {pipeline_mode = #tpu.pipeline_mode<synchronous>, transform_indices = @transform_11, window_bounds = array<i64: 2, 8, 32>}]} {
    %c0_i32 = arith.constant 0 : i32
    %0 = arith.cmpi eq, %arg0, %c0_i32 : i32
    %1 = arith.extui %0 : i1 to i32
    %c0_i32_0 = arith.constant 0 : i32
    %2 = arith.cmpi ne, %1, %c0_i32_0 : i32
    scf.if %2 {
      %c0_73 = arith.constant 0 : index
      %c0_74 = arith.constant 0 : index
      %c0_75 = arith.constant 0 : index
      %117 = vector.load %arg2[%c0_73, %c0_74, %c0_75] : memref<2x8x32xf32, #tpu.memory_space<vmem>>, vector<2x8x32xf32>
      %c0_76 = arith.constant 0 : index
      %c0_77 = arith.constant 0 : index
      %c0_78 = arith.constant 0 : index
      %118 = vector.load %arg13[%c0_76, %c0_77, %c0_78] : memref<2x8x32xf32, #tpu.memory_space<vmem>>, vector<2x8x32xf32>
      tpu.vector_store %arg13[%c0_76, %c0_77, %c0_78], %117 {strides = array<i32>} : memref<2x8x32xf32, #tpu.memory_space<vmem>>, vector<2x8x32xf32>,
      %c0_79 = arith.constant 0 : index
      %c0_80 = arith.constant 0 : index
      %c0_81 = arith.constant 0 : index
      %119 = vector.load %arg3[%c0_79, %c0_80, %c0_81] : memref<2x8x32xf32, #tpu.memory_space<vmem>>, vector<2x8x32xf32>
      %c0_82 = arith.constant 0 : index
      %c0_83 = arith.constant 0 : index
      %c0_84 = arith.constant 0 : index
      %120 = vector.load %arg14[%c0_82, %c0_83, %c0_84] : memref<2x8x32xf32, #tpu.memory_space<vmem>>, vector<2x8x32xf32>
      tpu.vector_store %arg14[%c0_82, %c0_83, %c0_84], %119 {strides = array<i32>} : memref<2x8x32xf32, #tpu.memory_space<vmem>>, vector<2x8x32xf32>,
    } else {
    }
    %3 = tpu.iota {dimensions = array<i32: 1>} : vector<1x128xi32>
    %c64_i32 = arith.constant 64 : i32
    %4 = vector.broadcast %c64_i32 : i32 to vector<1x128xi32>
    %5 = arith.cmpi sge, %3, %4 : vector<1x128xi32>
    %c96_i32 = arith.constant 96 : i32
    %6 = vector.broadcast %c96_i32 : i32 to vector<1x128xi32>
    %7 = arith.cmpi slt, %3, %6 : vector<1x128xi32>
    %8 = arith.andi %5, %7 : vector<1x128xi1>
    %cst = arith.constant 2.000000e+00 : f32
    %cst_1 = arith.constant 1.000000e+00 : f32
    %9 = vector.broadcast %cst : f32 to vector<1x128xf32>
    %10 = vector.broadcast %cst_1 : f32 to vector<1x128xf32>
    %11 = arith.select %8, %9, %10 : vector<1x128xi1>, vector<1x128xf32>
    %cst_2 = arith.constant -1.000000e+00 : f32
    %cst_3 = arith.constant 0.000000e+00 : f32
    %12 = vector.broadcast %cst_2 : f32 to vector<1x128xf32>
    %13 = vector.broadcast %cst_3 : f32 to vector<1x128xf32>
    %14 = arith.select %8, %12, %13 : vector<1x128xi1>, vector<1x128xf32>
    %c0 = arith.constant 0 : index
    %c0_4 = arith.constant 0 : index
    %c0_5 = arith.constant 0 : index
    %15 = vector.load %arg1[%c0, %c0_4, %c0_5] : memref<1x8x16xf32, #tpu.memory_space<vmem>>, vector<1x8x16xf32>
    %16 = vector.shape_cast %15 : vector<1x8x16xf32> to vector<8x16xf32>
    %c0_6 = arith.constant 0 : index
    %c0_7 = arith.constant 0 : index
    %17 = vector.load %arg4[%c0_6, %c0_7] : memref<16x128xf32, #tpu.memory_space<vmem>>, vector<16x128xf32>
    %cst_8 = arith.constant dense<0.000000e+00> : vector<8x128xf32>
    %18 = tpu.matmul %16, %17, %cst_8 {dimension_numbers = #tpu.dot_dimension_numbers<[1], [0], [0], [1], [0, 0, 1, 1], [], []>} : vector<8x16xf32>, vector<16x128xf32>, vector<8x128xf32> -> vector<8x128xf32>
    %c0_9 = arith.constant 0 : index
    %c0_10 = arith.constant 0 : index
    %c0_11 = arith.constant 0 : index
    %19 = vector.load %arg7[%c0_9, %c0_10, %c0_11] : memref<2x1x128xf32, #tpu.memory_space<vmem>>, vector<1x1x128xf32>
    %20 = vector.shape_cast %19 : vector<1x1x128xf32> to vector<1x128xf32>
    %21 = vector.broadcast %20 : vector<1x128xf32> to vector<8x128xf32>
    %22 = arith.addf %18, %21 : vector<8x128xf32>
    %23 = vector.shape_cast %22 : vector<8x128xf32> to vector<1x8x128xf32>
    %c0_12 = arith.constant 0 : index
    %c0_13 = arith.constant 0 : index
    %c0_14 = arith.constant 0 : index
    %24 = vector.load %arg15[%c0_12, %c0_13, %c0_14] : memref<1x8x128xf32, #tpu.memory_space<vmem>>, vector<1x8x128xf32>
    tpu.vector_store %arg15[%c0_12, %c0_13, %c0_14], %23 {strides = array<i32>} : memref<1x8x128xf32, #tpu.memory_space<vmem>>, vector<1x8x128xf32>,
    %c0_i32_15 = arith.constant 0 : i32
    %25 = arith.index_cast %c0_i32_15 : i32 to index
    %c0_16 = arith.constant 0 : index
    %c0_17 = arith.constant 0 : index
    %26 = vector.load %arg15[%25, %c0_16, %c0_17] : memref<1x8x128xf32, #tpu.memory_space<vmem>>, vector<1x8x128xf32>
    %27 = vector.shape_cast %26 : vector<1x8x128xf32> to vector<8x128xf32>
    %c0_18 = arith.constant 0 : index
    %c0_19 = arith.constant 0 : index
    %c0_20 = arith.constant 0 : index
    %28 = vector.load %arg13[%c0_18, %c0_19, %c0_20] : memref<2x8x32xf32, #tpu.memory_space<vmem>>, vector<1x8x32xf32>
    %29 = vector.shape_cast %28 : vector<1x8x32xf32> to vector<8x32xf32>
    %c0_21 = arith.constant 0 : index
    %c0_22 = arith.constant 0 : index
    %30 = vector.load %arg5[%c0_21, %c0_22] : memref<32x128xf32, #tpu.memory_space<vmem>>, vector<32x128xf32>
    %cst_23 = arith.constant dense<0.000000e+00> : vector<8x128xf32>
    %31 = tpu.matmul %29, %30, %cst_23 {dimension_numbers = #tpu.dot_dimension_numbers<[1], [0], [0], [1], [0, 0, 1, 1], [], []>} : vector<8x32xf32>, vector<32x128xf32>, vector<8x128xf32> -> vector<8x128xf32>
    %32 = arith.addf %27, %31 : vector<8x128xf32>
    %33 = vector.broadcast %11 : vector<1x128xf32> to vector<8x128xf32>
    %34 = arith.mulf %32, %33 : vector<8x128xf32>
    %35 = arith.negf %34 : vector<8x128xf32>
    %36 = math.exp %35 : vector<8x128xf32>
    %cst_24 = arith.constant 1.000000e+00 : f32
    %37 = vector.broadcast %cst_24 : f32 to vector<8x128xf32>
    %38 = arith.addf %37, %36 : vector<8x128xf32>
    %39 = arith.divf %37, %38 : vector<8x128xf32>
    %40 = vector.broadcast %11 : vector<1x128xf32> to vector<8x128xf32>
    %41 = arith.mulf %39, %40 : vector<8x128xf32>
    %42 = vector.broadcast %14 : vector<1x128xf32> to vector<8x128xf32>
    %43 = arith.addf %41, %42 : vector<8x128xf32>
    %44 = vector.extract_strided_slice %43 {offsets = [0, 0], sizes = [8, 32], strides = [1, 1]} : vector<8x128xf32> to vector<8x32xf32>
    %45 = vector.extract_strided_slice %43 {offsets = [0, 32], sizes = [8, 32], strides = [1, 1]} : vector<8x128xf32> to vector<8x32xf32>
    %46 = vector.extract_strided_slice %43 {offsets = [0, 64], sizes = [8, 32], strides = [1, 1]} : vector<8x128xf32> to vector<8x32xf32>
    %47 = vector.extract_strided_slice %43 {offsets = [0, 96], sizes = [8, 32], strides = [1, 1]} : vector<8x128xf32> to vector<8x32xf32>
    %c0_25 = arith.constant 0 : index
    %c0_26 = arith.constant 0 : index
    %c0_27 = arith.constant 0 : index
    %48 = vector.load %arg14[%c0_25, %c0_26, %c0_27] : memref<2x8x32xf32, #tpu.memory_space<vmem>>, vector<1x8x32xf32>
    %49 = vector.shape_cast %48 : vector<1x8x32xf32> to vector<8x32xf32>
    %50 = arith.mulf %45, %49 : vector<8x32xf32>
    %51 = arith.mulf %44, %46 : vector<8x32xf32>
    %52 = arith.addf %50, %51 : vector<8x32xf32>
    %53 = math.tanh %52 : vector<8x32xf32>
    %54 = arith.mulf %47, %53 : vector<8x32xf32>
    %c0_28 = arith.constant 0 : index
    %c0_29 = arith.constant 0 : index
    %c0_30 = arith.constant 0 : index
    %55 = vector.load %arg13[%c0_28, %c0_29, %c0_30] : memref<2x8x32xf32, #tpu.memory_space<vmem>>, vector<1x8x32xf32>
    %56 = vector.shape_cast %55 : vector<1x8x32xf32> to vector<8x32xf32>
    %57 = vector.shape_cast %54 : vector<8x32xf32> to vector<1x8x32xf32>
    tpu.vector_store %arg13[%c0_28, %c0_29, %c0_30], %57 {strides = array<i32>} : memref<2x8x32xf32, #tpu.memory_space<vmem>>, vector<1x8x32xf32>,
    %c0_31 = arith.constant 0 : index
    %c0_32 = arith.constant 0 : index
    %c0_33 = arith.constant 0 : index
    %58 = vector.load %arg14[%c0_31, %c0_32, %c0_33] : memref<2x8x32xf32, #tpu.memory_space<vmem>>, vector<1x8x32xf32>
    %59 = vector.shape_cast %58 : vector<1x8x32xf32> to vector<8x32xf32>
    %60 = vector.shape_cast %52 : vector<8x32xf32> to vector<1x8x32xf32>
    tpu.vector_store %arg14[%c0_31, %c0_32, %c0_33], %60 {strides = array<i32>} : memref<2x8x32xf32, #tpu.memory_space<vmem>>, vector<1x8x32xf32>,
    %c0_34 = arith.constant 0 : index
    %c0_35 = arith.constant 0 : index
    %61 = vector.load %arg17[%c0_34, %c0_35] : memref<8x64xf32, #tpu.memory_space<vmem>>, vector<8x32xf32>
    tpu.vector_store %arg17[%c0_34, %c0_35], %54 {strides = array<i32>} : memref<8x64xf32, #tpu.memory_space<vmem>>, vector<8x32xf32>,
    %c1 = arith.constant 1 : index
    %c0_36 = arith.constant 0 : index
    %c0_37 = arith.constant 0 : index
    %62 = vector.load %arg13[%c1, %c0_36, %c0_37] : memref<2x8x32xf32, #tpu.memory_space<vmem>>, vector<1x8x32xf32>
    %63 = vector.shape_cast %62 : vector<1x8x32xf32> to vector<8x32xf32>
    %c0_38 = arith.constant 0 : index
    %c32 = arith.constant 32 : index
    %64 = vector.load %arg17[%c0_38, %c32] : memref<8x64xf32, #tpu.memory_space<vmem>>, vector<8x32xf32>
    tpu.vector_store %arg17[%c0_38, %c32], %63 {strides = array<i32>} : memref<8x64xf32, #tpu.memory_space<vmem>>, vector<8x32xf32>,
    %c0_39 = arith.constant 0 : index
    %c0_40 = arith.constant 0 : index
    %65 = vector.load %arg17[%c0_39, %c0_40] : memref<8x64xf32, #tpu.memory_space<vmem>>, vector<8x64xf32>
    %c0_41 = arith.constant 0 : index
    %c0_42 = arith.constant 0 : index
    %c0_43 = arith.constant 0 : index
    %66 = vector.load %arg6[%c0_41, %c0_42, %c0_43] : memref<1x64x128xf32, #tpu.memory_space<vmem>>, vector<1x64x128xf32>
    %67 = vector.shape_cast %66 : vector<1x64x128xf32> to vector<64x128xf32>
    %cst_44 = arith.constant dense<0.000000e+00> : vector<8x128xf32>
    %68 = tpu.matmul %65, %67, %cst_44 {dimension_numbers = #tpu.dot_dimension_numbers<[1], [0], [0], [1], [0, 0, 1, 1], [], []>} : vector<8x64xf32>, vector<64x128xf32>, vector<8x128xf32> -> vector<8x128xf32>
    %c1_45 = arith.constant 1 : index
    %c0_46 = arith.constant 0 : index
    %c0_47 = arith.constant 0 : index
    %69 = vector.load %arg7[%c1_45, %c0_46, %c0_47] : memref<2x1x128xf32, #tpu.memory_space<vmem>>, vector<1x1x128xf32>
    %70 = vector.shape_cast %69 : vector<1x1x128xf32> to vector<1x128xf32>
    %71 = vector.broadcast %70 : vector<1x128xf32> to vector<8x128xf32>
    %72 = arith.addf %68, %71 : vector<8x128xf32>
    %73 = vector.broadcast %11 : vector<1x128xf32> to vector<8x128xf32>
    %74 = arith.mulf %72, %73 : vector<8x128xf32>
    %75 = arith.negf %74 : vector<8x128xf32>
    %76 = math.exp %75 : vector<8x128xf32>
    %cst_48 = arith.constant 1.000000e+00 : f32
    %77 = vector.broadcast %cst_48 : f32 to vector<8x128xf32>
    %78 = arith.addf %77, %76 : vector<8x128xf32>
    %79 = arith.divf %77, %78 : vector<8x128xf32>
    %80 = vector.broadcast %11 : vector<1x128xf32> to vector<8x128xf32>
    %81 = arith.mulf %79, %80 : vector<8x128xf32>
    %82 = vector.broadcast %14 : vector<1x128xf32> to vector<8x128xf32>
    %83 = arith.addf %81, %82 : vector<8x128xf32>
    %84 = vector.extract_strided_slice %83 {offsets = [0, 0], sizes = [8, 32], strides = [1, 1]} : vector<8x128xf32> to vector<8x32xf32>
    %85 = vector.extract_strided_slice %83 {offsets = [0, 32], sizes = [8, 32], strides = [1, 1]} : vector<8x128xf32> to vector<8x32xf32>
    %86 = vector.extract_strided_slice %83 {offsets = [0, 64], sizes = [8, 32], strides = [1, 1]} : vector<8x128xf32> to vector<8x32xf32>
    %87 = vector.extract_strided_slice %83 {offsets = [0, 96], sizes = [8, 32], strides = [1, 1]} : vector<8x128xf32> to vector<8x32xf32>
    %c1_49 = arith.constant 1 : index
    %c0_50 = arith.constant 0 : index
    %c0_51 = arith.constant 0 : index
    %88 = vector.load %arg14[%c1_49, %c0_50, %c0_51] : memref<2x8x32xf32, #tpu.memory_space<vmem>>, vector<1x8x32xf32>
    %89 = vector.shape_cast %88 : vector<1x8x32xf32> to vector<8x32xf32>
    %90 = arith.mulf %85, %89 : vector<8x32xf32>
    %91 = arith.mulf %84, %86 : vector<8x32xf32>
    %92 = arith.addf %90, %91 : vector<8x32xf32>
    %93 = math.tanh %92 : vector<8x32xf32>
    %94 = arith.mulf %87, %93 : vector<8x32xf32>
    %c1_52 = arith.constant 1 : index
    %c0_53 = arith.constant 0 : index
    %c0_54 = arith.constant 0 : index
    %95 = vector.load %arg13[%c1_52, %c0_53, %c0_54] : memref<2x8x32xf32, #tpu.memory_space<vmem>>, vector<1x8x32xf32>
    %96 = vector.shape_cast %95 : vector<1x8x32xf32> to vector<8x32xf32>
    %97 = vector.shape_cast %94 : vector<8x32xf32> to vector<1x8x32xf32>
    tpu.vector_store %arg13[%c1_52, %c0_53, %c0_54], %97 {strides = array<i32>} : memref<2x8x32xf32, #tpu.memory_space<vmem>>, vector<1x8x32xf32>,
    %c1_55 = arith.constant 1 : index
    %c0_56 = arith.constant 0 : index
    %c0_57 = arith.constant 0 : index
    %98 = vector.load %arg14[%c1_55, %c0_56, %c0_57] : memref<2x8x32xf32, #tpu.memory_space<vmem>>, vector<1x8x32xf32>
    %99 = vector.shape_cast %98 : vector<1x8x32xf32> to vector<8x32xf32>
    %100 = vector.shape_cast %92 : vector<8x32xf32> to vector<1x8x32xf32>
    tpu.vector_store %arg14[%c1_55, %c0_56, %c0_57], %100 {strides = array<i32>} : memref<2x8x32xf32, #tpu.memory_space<vmem>>, vector<1x8x32xf32>,
    %101 = arith.index_cast %c0_i32_15 : i32 to index
    %c0_58 = arith.constant 0 : index
    %c0_59 = arith.constant 0 : index
    %102 = vector.load %arg16[%101, %c0_58, %c0_59] : memref<1x8x32xf32, #tpu.memory_space<vmem>>, vector<1x8x32xf32>
    %103 = vector.shape_cast %102 : vector<1x8x32xf32> to vector<8x32xf32>
    %104 = vector.shape_cast %94 : vector<8x32xf32> to vector<1x8x32xf32>
    tpu.vector_store %arg16[%101, %c0_58, %c0_59], %104 {strides = array<i32>} : memref<1x8x32xf32, #tpu.memory_space<vmem>>, vector<1x8x32xf32>,
    %c1_i32 = arith.constant 1 : i32
    %c0_60 = arith.constant 0 : index
    %c0_61 = arith.constant 0 : index
    %c0_62 = arith.constant 0 : index
    %105 = vector.load %arg16[%c0_60, %c0_61, %c0_62] : memref<1x8x32xf32, #tpu.memory_space<vmem>>, vector<1x8x32xf32>
    %106 = vector.shape_cast %105 : vector<1x8x32xf32> to vector<8x32xf32>
    %c0_63 = arith.constant 0 : index
    %c0_64 = arith.constant 0 : index
    %107 = vector.load %arg8[%c0_63, %c0_64] : memref<32x128xf32, #tpu.memory_space<vmem>>, vector<32x128xf32>
    %cst_65 = arith.constant dense<0.000000e+00> : vector<8x128xf32>
    %108 = tpu.matmul %106, %107, %cst_65 {dimension_numbers = #tpu.dot_dimension_numbers<[1], [0], [0], [1], [0, 0, 1, 1], [], []>} : vector<8x32xf32>, vector<32x128xf32>, vector<8x128xf32> -> vector<8x128xf32>
    %c0_66 = arith.constant 0 : index
    %c0_67 = arith.constant 0 : index
    %109 = vector.load %arg9[%c0_66, %c0_67] : memref<1x128xf32, #tpu.memory_space<vmem>>, vector<1x128xf32>
    %110 = vector.broadcast %109 : vector<1x128xf32> to vector<8x128xf32>
    %111 = arith.addf %108, %110 : vector<8x128xf32>
    %112 = vector.shape_cast %111 : vector<8x128xf32> to vector<1x8x128xf32>
    %c0_68 = arith.constant 0 : index
    %c0_69 = arith.constant 0 : index
    %c0_70 = arith.constant 0 : index
    %113 = vector.load %arg10[%c0_68, %c0_69, %c0_70] : memref<1x8x128xf32, #tpu.memory_space<vmem>>, vector<1x8x128xf32>
    tpu.vector_store %arg10[%c0_68, %c0_69, %c0_70], %112 {strides = array<i32>} : memref<1x8x128xf32, #tpu.memory_space<vmem>>, vector<1x8x128xf32>,
    %c0_i32_71 = arith.constant 0 : i32
    %114 = arith.cmpi eq, %arg0, %c0_i32_71 : i32
    %115 = arith.extui %114 : i1 to i32
    %c0_i32_72 = arith.constant 0 : i32
    %116 = arith.cmpi ne, %115, %c0_i32_72 : i32
    scf.if %116 {
      %c0_73 = arith.constant 0 : index
      %c0_74 = arith.constant 0 : index
      %c0_75 = arith.constant 0 : index
      %117 = vector.load %arg13[%c0_73, %c0_74, %c0_75] : memref<2x8x32xf32, #tpu.memory_space<vmem>>, vector<2x8x32xf32>
      %c0_76 = arith.constant 0 : index
      %c0_77 = arith.constant 0 : index
      %c0_78 = arith.constant 0 : index
      %118 = vector.load %arg11[%c0_76, %c0_77, %c0_78] : memref<2x8x32xf32, #tpu.memory_space<vmem>>, vector<2x8x32xf32>
      tpu.vector_store %arg11[%c0_76, %c0_77, %c0_78], %117 {strides = array<i32>} : memref<2x8x32xf32, #tpu.memory_space<vmem>>, vector<2x8x32xf32>,
      %c0_79 = arith.constant 0 : index
      %c0_80 = arith.constant 0 : index
      %c0_81 = arith.constant 0 : index
      %119 = vector.load %arg14[%c0_79, %c0_80, %c0_81] : memref<2x8x32xf32, #tpu.memory_space<vmem>>, vector<2x8x32xf32>
      %c0_82 = arith.constant 0 : index
      %c0_83 = arith.constant 0 : index
      %c0_84 = arith.constant 0 : index
      %120 = vector.load %arg12[%c0_82, %c0_83, %c0_84] : memref<2x8x32xf32, #tpu.memory_space<vmem>>, vector<2x8x32xf32>
      tpu.vector_store %arg12[%c0_82, %c0_83, %c0_84], %119 {strides = array<i32>} : memref<2x8x32xf32, #tpu.memory_space<vmem>>, vector<2x8x32xf32>,
    } else {
    }
    return
  }
  func.func @transform_0(%arg0: i32) -> (i32, i32, i32) {
    %c0_i32 = arith.constant 0 : i32
    %c0_i32_0 = arith.constant 0 : i32
    %c0_i32_1 = arith.constant 0 : i32
    return %arg0, %c0_i32, %c0_i32_0 : i32, i32, i32
  }
  func.func @transform_1(%arg0: i32) -> (i32, i32, i32) {
    %c0_i32 = arith.constant 0 : i32
    %c0_i32_0 = arith.constant 0 : i32
    %c0_i32_1 = arith.constant 0 : i32
    %c0_i32_2 = arith.constant 0 : i32
    return %c0_i32, %c0_i32_0, %c0_i32_1 : i32, i32, i32
  }
  func.func @transform_2(%arg0: i32) -> (i32, i32, i32) {
    %c0_i32 = arith.constant 0 : i32
    %c0_i32_0 = arith.constant 0 : i32
    %c0_i32_1 = arith.constant 0 : i32
    %c0_i32_2 = arith.constant 0 : i32
    return %c0_i32, %c0_i32_0, %c0_i32_1 : i32, i32, i32
  }
  func.func @transform_3(%arg0: i32) -> (i32, i32) {
    %c0_i32 = arith.constant 0 : i32
    %c0_i32_0 = arith.constant 0 : i32
    %c0_i32_1 = arith.constant 0 : i32
    return %c0_i32, %c0_i32_0 : i32, i32
  }
  func.func @transform_4(%arg0: i32) -> (i32, i32) {
    %c0_i32 = arith.constant 0 : i32
    %c0_i32_0 = arith.constant 0 : i32
    %c0_i32_1 = arith.constant 0 : i32
    return %c0_i32, %c0_i32_0 : i32, i32
  }
  func.func @transform_5(%arg0: i32) -> (i32, i32, i32) {
    %c0_i32 = arith.constant 0 : i32
    %c0_i32_0 = arith.constant 0 : i32
    %c0_i32_1 = arith.constant 0 : i32
    %c0_i32_2 = arith.constant 0 : i32
    return %c0_i32, %c0_i32_0, %c0_i32_1 : i32, i32, i32
  }
  func.func @transform_6(%arg0: i32) -> (i32, i32, i32) {
    %c0_i32 = arith.constant 0 : i32
    %c0_i32_0 = arith.constant 0 : i32
    %c0_i32_1 = arith.constant 0 : i32
    %c0_i32_2 = arith.constant 0 : i32
    return %c0_i32, %c0_i32_0, %c0_i32_1 : i32, i32, i32
  }
  func.func @transform_7(%arg0: i32) -> (i32, i32) {
    %c0_i32 = arith.constant 0 : i32
    %c0_i32_0 = arith.constant 0 : i32
    %c0_i32_1 = arith.constant 0 : i32
    return %c0_i32, %c0_i32_0 : i32, i32
  }
  func.func @transform_8(%arg0: i32) -> (i32, i32) {
    %c0_i32 = arith.constant 0 : i32
    %c0_i32_0 = arith.constant 0 : i32
    %c0_i32_1 = arith.constant 0 : i32
    return %c0_i32, %c0_i32_0 : i32, i32
  }
  func.func @transform_9(%arg0: i32) -> (i32, i32, i32) {
    %c0_i32 = arith.constant 0 : i32
    %c0_i32_0 = arith.constant 0 : i32
    %c0_i32_1 = arith.constant 0 : i32
    return %arg0, %c0_i32, %c0_i32_0 : i32, i32, i32
  }
  func.func @transform_10(%arg0: i32) -> (i32, i32, i32) {
    %c0_i32 = arith.constant 0 : i32
    %c0_i32_0 = arith.constant 0 : i32
    %c0_i32_1 = arith.constant 0 : i32
    %c0_i32_2 = arith.constant 0 : i32
    return %c0_i32, %c0_i32_0, %c0_i32_1 : i32, i32, i32
  }
  func.func @transform_11(%arg0: i32) -> (i32, i32, i32) {
    %c0_i32 = arith.constant 0 : i32
    %c0_i32_0 = arith.constant 0 : i32
    %c0_i32_1 = arith.constant 0 : i32
    %c0_i32_2 = arith.constant 0 : i32
    return %c0_i32, %c0_i32_0, %c0_i32_1 : i32, i32, i32
  }
}

</mosaic_0001>

<llo_original>
// kernel: _fused_lstm_seq.1
$region0: #{_fused_lstm_seq.1}
  #allocation0 [shape = 'u32[]', space=smem, size = 0x4, offset = 0x4, fixed_abs, tag = 'smem constant byte address 0x4 - core index']
  #allocation1 [shape = 'u32[72,128]{1,0:T(1,128)}', space=vmem, size = 0x9000, scoped, tag = 'internal scratch']
  #allocation2 [shape = 'f32[2,8,32]{2,1,0:T(8,128)}', space=vmem, size = 0x2000, scoped, tag = 'scratch operand']
  #allocation3 [shape = 'f32[2,8,32]{2,1,0:T(8,128)}', space=vmem, size = 0x2000, scoped, tag = 'scratch operand']
  #allocation4 [shape = 'f32[1,8,128]{2,1,0:T(8,128)}', space=vmem, size = 0x1000, scoped, tag = 'scratch operand']
  #allocation5 [shape = 'f32[1,8,32]{2,1,0:T(8,128)}', space=vmem, size = 0x1000, scoped, tag = 'scratch operand']
  #allocation6 [shape = 'f32[8,64]{1,0:T(8,128)}', space=vmem, size = 0x1000, scoped, tag = 'scratch operand']
  %s0 = inlined_call_operand.vmem [shape: f32[1,8,16], index: 0, kind: input, shape index: {}]
  %s1 = inlined_call_operand.vmem [shape: f32[2,8,32], index: 1, kind: input, shape index: {}]
  %s2 = inlined_call_operand.vmem [shape: f32[2,8,32], index: 2, kind: input, shape index: {}]
  %s3 = inlined_call_operand.hbm [shape: f32[16,128], index: 3, kind: input, shape index: {}]
  %s4 = inlined_call_operand.vmem [shape: f32[32,128], index: 4, kind: input, shape index: {}]
  %s5 = inlined_call_operand.hbm [shape: f32[1,64,128], index: 5, kind: input, shape index: {}]
  %s6 = inlined_call_operand.vmem [shape: f32[2,1,128], index: 6, kind: input, shape index: {}]
  %s7 = inlined_call_operand.hbm [shape: f32[32,128], index: 7, kind: input, shape index: {}]
  %s8 = inlined_call_operand.vmem [shape: f32[1,128], index: 8, kind: input, shape index: {}]
  %s9 = inlined_call_operand.vmem [shape: f32[1,8,128], index: 9, kind: output, shape index: {0}]
  %s10 = inlined_call_operand.vmem [shape: f32[2,8,32], index: 10, kind: output, shape index: {1}]
  %s11 = inlined_call_operand.vmem [shape: f32[2,8,32], index: 11, kind: output, shape index: {2}]
  %12 = xla_tuple %s9, %s10, %s11
  %s13 = sld [smem:[#allocation0]]
  $region82: #{_fused_lstm_seq.1} parent=0
    _
  %s15 = ssub.s32 1, %s13
  %s16 = scalar_select 0, %s15, %s13
  $region1: #{_fused_lstm_seq.1} parent=0
    #allocation7 [shape = 'u8[8192]{0}', space=vmem, size = 0x2000, scoped, tag = 'input window, operand 3, single buffered']
    #allocation8 [shape = 's32[1]{0}', space=sflag, size = 0x4, scoped, tag = 'scoped memory for _fused_lstm_seq.1']
    #allocation9 [shape = 'u8[32768]{0}', space=vmem, size = 0x8000, scoped, tag = 'input window, operand 5, single buffered']
    #allocation10 [shape = 's32[1]{0}', space=sflag, size = 0x4, scoped, tag = 'scoped memory for _fused_lstm_seq.1']
    #allocation11 [shape = 'u8[16384]{0}', space=vmem, size = 0x4000, scoped, tag = 'input window, operand 7, single buffered']
    %17 = vsyncpa [#allocation8], 0
    %18 = vsyncpa [#allocation10], 0
    // Predicated region
    $region2: #{_fused_lstm_seq.1} parent=1 // pred_check
      _
    $region3: #{_fused_lstm_seq.1} parent=1 // pred_check_branch
      %20 = sbr.rel (0) target = $region5
    $region4: #{_fused_lstm_seq.1} parent=1 // pred_region
      _
    $region5: #{_fused_lstm_seq.1} parent=1 // pred_fallthru
      _
    // Predicated region
    $region6: #{_fused_lstm_seq.1} parent=1 // pred_check
      _
    $region7: #{_fused_lstm_seq.1} parent=1 // pred_check_branch
      %22 = sbr.rel (0) target = $region9
    $region8: #{_fused_lstm_seq.1} parent=1 // pred_region
      _
    $region9: #{_fused_lstm_seq.1} parent=1 // pred_fallthru
      _
    // Predicated region
    $region10: #{_fused_lstm_seq.1} parent=1 // pred_check
      _
    $region11: #{_fused_lstm_seq.1} parent=1 // pred_check_branch
      %24 = sbr.rel (0) target = $region13
    $region12: #{_fused_lstm_seq.1} parent=1 // pred_region
      _
    $region13: #{_fused_lstm_seq.1} parent=1 // pred_fallthru
      _
    // Predicated region
    $region14: #{_fused_lstm_seq.1} parent=1 // pred_check
      _
    $region15: #{_fused_lstm_seq.1} parent=1 // pred_check_branch
      %26 = sbr.rel (0) target = $region17
    $region16: #{_fused_lstm_seq.1} parent=1 // pred_region
      %28 = vsyncadd [#allocation8], 0
      %s29 = sshll.u32 %s3, 4
      %s30 = int_to_ptr.hbm [resolvable:$true] %s29
      %s31 = sshll.u32 [#allocation7], 4
      %s32 = int_to_ptr.vmem [resolvable:$true] %s31
      %37 = dma.hbm_to_vmem [thread:$0]  %s30, 256, %s32, [#allocation8], 128, 128, 8
    $region17: #{_fused_lstm_seq.1} parent=1 // pred_fallthru
      _
    // Predicated region
    $region18: #{_fused_lstm_seq.1} parent=1 // pred_check
      _
    $region19: #{_fused_lstm_seq.1} parent=1 // pred_check_branch
      %39 = sbr.rel (0) target = $region21
    $region20: #{_fused_lstm_seq.1} parent=1 // pred_region
      _
    $region21: #{_fused_lstm_seq.1} parent=1 // pred_fallthru
      _
    // Predicated region
    $region22: #{_fused_lstm_seq.1} parent=1 // pred_check
      _
    $region23: #{_fused_lstm_seq.1} parent=1 // pred_check_branch
      %41 = sbr.rel (0) target = $region25
    $region24: #{_fused_lstm_seq.1} parent=1 // pred_region
      %43 = vsyncadd [#allocation10], 0
      %s44 = sshll.u32 %s5, 4
      %s45 = int_to_ptr.hbm [resolvable:$true] %s44
      %s46 = sshll.u32 [#allocation9], 4
      %s47 = int_to_ptr.vmem [resolvable:$true] %s46
      %52 = dma.hbm_to_vmem [thread:$0]  %s45, 1024, %s47, [#allocation10], 128, 128, 8
    $region25: #{_fused_lstm_seq.1} parent=1 // pred_fallthru
      _
    // Predicated region
    $region26: #{_fused_lstm_seq.1} parent=1 // pred_check
      _
    $region27: #{_fused_lstm_seq.1} parent=1 // pred_check_branch
      %54 = sbr.rel (0) target = $region29
    $region28: #{_fused_lstm_seq.1} parent=1 // pred_region
      _
    $region29: #{_fused_lstm_seq.1} parent=1 // pred_fallthru
      _
    // Predicated region
    $region30: #{_fused_lstm_seq.1} parent=1 // pred_check
      _
    $region31: #{_fused_lstm_seq.1} parent=1 // pred_check_branch
      %56 = sbr.rel (0) target = $region33
    $region32: #{_fused_lstm_seq.1} parent=1 // pred_region
      %58 = vsyncadd [#allocation10], 0
      %s59 = sshll.u32 %s7, 4
      %s60 = int_to_ptr.hbm [resolvable:$true] %s59
      %s61 = sshll.u32 [#allocation11], 4
      %s62 = int_to_ptr.vmem [resolvable:$true] %s61
      %67 = dma.hbm_to_vmem [thread:$0]  %s60, 512, %s62, [#allocation10], 128, 128, 8
    $region33: #{_fused_lstm_seq.1} parent=1 // pred_fallthru
      _
    // Predicated region
    $region34: #{_fused_lstm_seq.1} parent=1 // pred_check
      _
    $region35: #{_fused_lstm_seq.1} parent=1 // pred_check_branch
      %69 = sbr.rel (0) target = $region37
    $region36: #{_fused_lstm_seq.1} parent=1 // pred_region
      _
    $region37: #{_fused_lstm_seq.1} parent=1 // pred_fallthru
      _
    // Predicated region
    $region38: #{_fused_lstm_seq.1} parent=1 // pred_check
      _
    $region39: #{_fused_lstm_seq.1} parent=1 // pred_check_branch
      %71 = sbr.rel (0) target = $region41
    $region40: #{_fused_lstm_seq.1} parent=1 // pred_region
      %73 = dma.done [#allocation8], 256
    $region41: #{_fused_lstm_seq.1} parent=1 // pred_fallthru
      _
    // Predicated region
    $region42: #{_fused_lstm_seq.1} parent=1 // pred_check
      _
    $region43: #{_fused_lstm_seq.1} parent=1 // pred_check_branch
      %75 = sbr.rel (0) target = $region45
    $region44: #{_fused_lstm_seq.1} parent=1 // pred_region
      %77 = dma.done [#allocation10], 1024
    $region45: #{_fused_lstm_seq.1} parent=1 // pred_fallthru
      _
    // Predicated region
    $region46: #{_fused_lstm_seq.1} parent=1 // pred_check
      _
    $region47: #{_fused_lstm_seq.1} parent=1 // pred_check_branch
      %79 = sbr.rel (0) target = $region49
    $region48: #{_fused_lstm_seq.1} parent=1 // pred_region
      %81 = dma.done [#allocation10], 512
    $region49: #{_fused_lstm_seq.1} parent=1 // pred_fallthru
      _
    %p82 = scmp.eq.s32.totalorder 0, 0
    // Predicated region
    $region50: #{_fused_lstm_seq.1} parent=1 // pred_check
      %p83 = pneg %p82
    $region51: #{_fused_lstm_seq.1} parent=1 // pred_check_branch
      %85 = sbr.rel (%p83) target = $region53
    $region52: #{_fused_lstm_seq.1} parent=1 // pred_region
      %v86 = vld [vmem:[%s1] sm:$0xff]
      %v87 = vld [vmem:[%s1 + $0x8] sm:$0xff]
      %vm88 = vcmask 261120
      %89 = vst.msk [vmem:[#allocation2] sm:$0xff] %vm88, %v86
      %90 = vst.msk [vmem:[#allocation2 + $0x8] sm:$0xff] %vm88, %v87
      %v91 = vld [vmem:[%s2] sm:$0xff]
      %v92 = vld [vmem:[%s2 + $0x8] sm:$0xff]
      %93 = vst.msk [vmem:[#allocation3] sm:$0xff] %vm88, %v91
      %94 = vst.msk [vmem:[#allocation3 + $0x8] sm:$0xff] %vm88, %v92
    $region53: #{_fused_lstm_seq.1} parent=1 // pred_fallthru
      _
    %v95 = vlaneseq
    %v96 = vand.u32 %v95, 127
    %vm97 = vcmp.ge.s32.totalorder %v96, 64
    %vm98 = vcmp.lt.s32.totalorder %v96, 96
    %vm99 = vmand %vm97, %vm98
    %v100 = vsel %vm99, 2.0, 1.0
    %v101 = vsel %vm99, -1.0, 0.0
    %v102 = vld [vmem:[%s0] sm:$0xff]
    %v103 = vld [vmem:[#allocation7] sm:$0xff]
    %v104 = vld [vmem:[#allocation7 + $0x8] sm:$0xff]
    %v105 = vld [vmem:[%s6] sm:$0x1]
    %v107 = vperm.slane %v105, 0
    %vm109 = vcmask 130048
    %v111 = vsel %vm109, %v102, 0
    %113 = vmatpush.msra.mxu0 0.0
    %114 = vmatpush.msra.mxu0 0.0
    %115 = vmatpush.msra.mxu0 0.0
    %116 = vmatpush.msra.mxu0 0.0
    %117 = vmatpush.msra.mxu0 0.0
    %118 = vmatpush.msra.mxu0 0.0
    %119 = vmatpush.msra.mxu0 0.0
    %120 = vmatpush.msra.mxu0 0.0
    %121 = vmatpush.msra.mxu0 0.0
    %122 = vmatpush.msra.mxu0 0.0
    %123 = vmatpush.msra.mxu0 0.0
    %124 = vmatpush.msra.mxu0 0.0
    %125 = vmatpush.msra.mxu0 0.0
    %126 = vmatpush.msra.mxu0 0.0
    %127 = vmatpush.msra.mxu0 %v104
    %128 = vmatpush.msra.mxu0 %v103
    %129 = vmatmul.f32.gmra.mxu0 %v111
    %v130 = vpop.f32.mrf.mxu0
    %v131 = vadd.f32 %v107, %v130
    %132 = vdwg.mxu0
    %133 = vst [vmem:[#allocation4] sm:$0xff] %v131
    %v134 = vld [vmem:[#allocation4] sm:$0xff]
    %v135 = vld [vmem:[#allocation2] sm:$0xff]
    %v136 = vld [vmem:[%s4] sm:$0xff]
    %v137 = vld [vmem:[%s4 + $0x8] sm:$0xff]
    %v138 = vld [vmem:[%s4 + $0x10] sm:$0xff]
    %v139 = vld [vmem:[%s4 + $0x18] sm:$0xff]
    %vm140 = vcmask 261120
    %v142 = vsel %vm140, %v135, 0
    %144 = vmatpush.msra.mxu0 0.0
    %145 = vmatpush.msra.mxu0 0.0
    %146 = vmatpush.msra.mxu0 0.0
    %147 = vmatpush.msra.mxu0 0.0
    %148 = vmatpush.msra.mxu0 0.0
    %149 = vmatpush.msra.mxu0 0.0
    %150 = vmatpush.msra.mxu0 0.0
    %151 = vmatpush.msra.mxu0 0.0
    %152 = vmatpush.msra.mxu0 0.0
    %153 = vmatpush.msra.mxu0 0.0
    %154 = vmatpush.msra.mxu0 0.0
    %155 = vmatpush.msra.mxu0 0.0
    %156 = vmatpush.msra.mxu0 %v139
    %157 = vmatpush.msra.mxu0 %v138
    %158 = vmatpush.msra.mxu0 %v137
    %159 = vmatpush.msra.mxu0 %v136
    %160 = vmatmul.f32.gmra.mxu0 %v142
    %v161 = vpop.f32.mrf.mxu0
    %v162 = vadd.f32 0.0, %v161
    %163 = vdwg.mxu0
    %v164 = vadd.f32 %v134, %v162
    %v165 = vmul.f32 %v164, %v100
    %v166 = vxor.u32 %v165, 2147483648
    %v167 = vmul.f32 %v166, 1.442695
    %v168 = vpow.pop %v167
    %v169 = vadd.f32 %v168, 1.0
    %v170 = vrcp.pop %v169
    %v171 = vmul.f32 %v169, %v170
    %v172 = vsub.f32 1.0, %v171
    %v173 = vmul.f32 %v170, %v172
    %v174 = vadd.f32 %v170, %v173
    %vm175 = vweird.f32 %v169
    %vm176 = vweird.f32 %v170
    %vm177 = vmor %vm175, %vm176
    %v178 = vsel %vm177, %v170, %v174
    %v179 = vand.u32 2147483647, %v169
    %vm180 = vcmp.eq.f32.partialorder %v179, 8.507059e+37
    %v181 = vand.u32 %v169, 2147483648
    %v182 = vor.u32 1.1754944e-38, %v181
    %v183 = vsel %vm180, %v182, %v178
    %v184 = vmul.f32 1.0, %v183
    %v185 = vmul.f32 %v184, %v100
    %v186 = vadd.f32 %v185, %v101
    %v187 = vld [vmem:[#allocation3] sm:$0xff]
    %189 = vrot.lane.b32.xlu0 %v187, 32
    %v190 = vpop.permute.xlu0 %189
    %v192 = vmul.f32 %v186, %v190
    %194 = vrot.lane.b32.xlu0 %v186, 64
    %v195 = vpop.permute.xlu0 %194
    %v197 = vmul.f32 %v186, %v195
    %199 = vrot.lane.b32.xlu0 %v197, 32
    %v200 = vpop.permute.xlu0 %199
    %v202 = vadd.f32 %v192, %v200
    %v203 = vtanh.pop %v202
    %205 = vrot.lane.b32.xlu0 %v203, 64
    %v206 = vpop.permute.xlu0 %205
    %v208 = vmul.f32 %v186, %v206
    %210 = vrot.lane.b32.xlu0 %v208, 32
    %v211 = vpop.permute.xlu0 %210
    %213 = vst.msk [vmem:[#allocation2] sm:$0xff] %vm140, %v211
    %215 = vrot.lane.b32.xlu0 %v202, 96
    %v216 = vpop.permute.xlu0 %215
    %218 = vst.msk [vmem:[#allocation3] sm:$0xff] %vm140, %v216
    %219 = vst.msk [vmem:[#allocation6] sm:$0xff] %vm140, %v211
    %s220 = scalar_lea.vmem [#allocation2], 8
    %v221 = vld [vmem:[%s220] sm:$0xff]
    %223 = vrot.lane.b32.xlu0 %v221, 32
    %v224 = vpop.permute.xlu0 %223
    %vm226 = vcmask 523520
    %227 = vst.msk [vmem:[#allocation6] sm:$0xff] %vm226, %v224
    %v228 = vld [vmem:[#allocation6] sm:$0xff]
    %v229 = vld [vmem:[#allocation9] sm:$0xff]
    %v230 = vld [vmem:[#allocation9 + $0x8] sm:$0xff]
    %v231 = vld [vmem:[#allocation9 + $0x10] sm:$0xff]
    %v232 = vld [vmem:[#allocation9 + $0x18] sm:$0xff]
    %v233 = vld [vmem:[#allocation9 + $0x20] sm:$0xff]
    %v234 = vld [vmem:[#allocation9 + $0x28] sm:$0xff]
    %v235 = vld [vmem:[#allocation9 + $0x30] sm:$0xff]
    %v236 = vld [vmem:[#allocation9 + $0x38] sm:$0xff]
    %s237 = scalar_lea.vmem %s6, 1
    %v238 = vld [vmem:[%s237] sm:$0x1]
    %v240 = vperm.slane %v238, 0
    %vm242 = vcmask 523264
    %v244 = vsel %vm242, %v228, 0
    %246 = vmatpush.msra.mxu0 0.0
    %247 = vmatpush.msra.mxu0 0.0
    %248 = vmatpush.msra.mxu0 0.0
    %249 = vmatpush.msra.mxu0 0.0
    %250 = vmatpush.msra.mxu0 0.0
    %251 = vmatpush.msra.mxu0 0.0
    %252 = vmatpush.msra.mxu0 0.0
    %253 = vmatpush.msra.mxu0 0.0
    %254 = vmatpush.msra.mxu0 %v236
    %255 = vmatpush.msra.mxu0 %v235
    %256 = vmatpush.msra.mxu0 %v234
    %257 = vmatpush.msra.mxu0 %v233
    %258 = vmatpush.msra.mxu0 %v232
    %259 = vmatpush.msra.mxu0 %v231
    %260 = vmatpush.msra.mxu0 %v230
    %261 = vmatpush.msra.mxu0 %v229
    %262 = vmatmul.f32.gmra.mxu0 %v244
    %v263 = vpop.f32.mrf.mxu0
    %v264 = vadd.f32 %v240, %v263
    %265 = vdwg.mxu0
    %v266 = vmul.f32 %v264, %v100
    %v267 = vxor.u32 %v266, 2147483648
    %v268 = vmul.f32 %v267, 1.442695
    %v269 = vpow.pop %v268
    %v270 = vadd.f32 %v269, 1.0
    %v271 = vrcp.pop %v270
    %v272 = vmul.f32 %v270, %v271
    %v273 = vsub.f32 1.0, %v272
    %v274 = vmul.f32 %v271, %v273
    %v275 = vadd.f32 %v271, %v274
    %vm276 = vweird.f32 %v270
    %vm277 = vweird.f32 %v271
    %vm278 = vmor %vm276, %vm277
    %v279 = vsel %vm278, %v271, %v275
    %v280 = vand.u32 2147483647, %v270
    %vm281 = vcmp.eq.f32.partialorder %v280, 8.507059e+37
    %v282 = vand.u32 %v270, 2147483648
    %v283 = vor.u32 1.1754944e-38, %v282
    %v284 = vsel %vm281, %v283, %v279
    %v285 = vmul.f32 1.0, %v284
    %v286 = vmul.f32 %v285, %v100
    %v287 = vadd.f32 %v286, %v101
    %s288 = scalar_lea.vmem [#allocation3], 8
    %v289 = vld [vmem:[%s288] sm:$0xff]
    %291 = vrot.lane.b32.xlu0 %v289, 32
    %v292 = vpop.permute.xlu0 %291
    %v294 = vmul.f32 %v287, %v292
    %296 = vrot.lane.b32.xlu0 %v287, 64
    %v297 = vpop.permute.xlu0 %296
    %v299 = vmul.f32 %v287, %v297
    %301 = vrot.lane.b32.xlu0 %v299, 32
    %v302 = vpop.permute.xlu0 %301
    %v304 = vadd.f32 %v294, %v302
    %v305 = vtanh.pop %v304
    %307 = vrot.lane.b32.xlu0 %v305, 64
    %v308 = vpop.permute.xlu0 %307
    %v310 = vmul.f32 %v287, %v308
    %312 = vrot.lane.b32.xlu0 %v310, 32
    %v313 = vpop.permute.xlu0 %312
    %315 = vst.msk [vmem:[%s220] sm:$0xff] %vm140, %v313
    %317 = vrot.lane.b32.xlu0 %v304, 96
    %v318 = vpop.permute.xlu0 %317
    %320 = vst.msk [vmem:[%s288] sm:$0xff] %vm140, %v318
    %321 = vst.msk [vmem:[#allocation5] sm:$0xff] %vm140, %v313
    %v322 = vld [vmem:[#allocation5] sm:$0xff]
    %v323 = vld [vmem:[#allocation11] sm:$0xff]
    %v324 = vld [vmem:[#allocation11 + $0x8] sm:$0xff]
    %v325 = vld [vmem:[#allocation11 + $0x10] sm:$0xff]
    %v326 = vld [vmem:[#allocation11 + $0x18] sm:$0xff]
    %v327 = vld [vmem:[%s8] sm:$0x1]
    %v329 = vperm.slane %v327, 0
    %v332 = vsel %vm140, %v322, 0
    %334 = vmatpush.msra.mxu0 0.0
    %335 = vmatpush.msra.mxu0 0.0
    %336 = vmatpush.msra.mxu0 0.0
    %337 = vmatpush.msra.mxu0 0.0
    %338 = vmatpush.msra.mxu0 0.0
    %339 = vmatpush.msra.mxu0 0.0
    %340 = vmatpush.msra.mxu0 0.0
    %341 = vmatpush.msra.mxu0 0.0
    %342 = vmatpush.msra.mxu0 0.0
    %343 = vmatpush.msra.mxu0 0.0
    %344 = vmatpush.msra.mxu0 0.0
    %345 = vmatpush.msra.mxu0 0.0
    %346 = vmatpush.msra.mxu0 %v326
    %347 = vmatpush.msra.mxu0 %v325
    %348 = vmatpush.msra.mxu0 %v324
    %349 = vmatpush.msra.mxu0 %v323
    %350 = vmatmul.f32.gmra.mxu0 %v332
    %v351 = vpop.f32.mrf.mxu0
    %v352 = vadd.f32 %v329, %v351
    %353 = vdwg.mxu0
    %354 = vst [vmem:[%s9] sm:$0xff] %v352
    // Predicated region
    $region54: #{_fused_lstm_seq.1} parent=1 // pred_check
      %p355 = pneg %p82
    $region55: #{_fused_lstm_seq.1} parent=1 // pred_check_branch
      %357 = sbr.rel (%p355) target = $region57
    $region56: #{_fused_lstm_seq.1} parent=1 // pred_region
      %v358 = vld [vmem:[#allocation2] sm:$0xff]
      %v359 = vld [vmem:[#allocation2 + $0x8] sm:$0xff]
      %360 = vst.msk [vmem:[%s10] sm:$0xff] %vm140, %v358
      %361 = vst.msk [vmem:[%s10 + $0x8] sm:$0xff] %vm140, %v359
      %v362 = vld [vmem:[#allocation3] sm:$0xff]
      %v363 = vld [vmem:[#allocation3 + $0x8] sm:$0xff]
      %364 = vst.msk [vmem:[%s11] sm:$0xff] %vm140, %v362
      %365 = vst.msk [vmem:[%s11 + $0x8] sm:$0xff] %vm140, %v363
    $region57: #{_fused_lstm_seq.1} parent=1 // pred_fallthru
      _
    // Predicated region
    $region58: #{_fused_lstm_seq.1} parent=1 // pred_check
      _
    $region59: #{_fused_lstm_seq.1} parent=1 // pred_check_branch
      %367 = sbr.rel (0) target = $region61
    $region60: #{_fused_lstm_seq.1} parent=1 // pred_region
      _
    $region61: #{_fused_lstm_seq.1} parent=1 // pred_fallthru
      _
    // Predicated region
    $region62: #{_fused_lstm_seq.1} parent=1 // pred_check
      _
    $region63: #{_fused_lstm_seq.1} parent=1 // pred_check_branch
      %369 = sbr.rel (0) target = $region65
    $region64: #{_fused_lstm_seq.1} parent=1 // pred_region
      _
    $region65: #{_fused_lstm_seq.1} parent=1 // pred_fallthru
      _
    // Predicated region
    $region66: #{_fused_lstm_seq.1} parent=1 // pred_check
      _
    $region67: #{_fused_lstm_seq.1} parent=1 // pred_check_branch
      %371 = sbr.rel (0) target = $region69
    $region68: #{_fused_lstm_seq.1} parent=1 // pred_region
      _
    $region69: #{_fused_lstm_seq.1} parent=1 // pred_fallthru
      _
    // Predicated region
    $region70: #{_fused_lstm_seq.1} parent=1 // pred_check
      _
    $region71: #{_fused_lstm_seq.1} parent=1 // pred_check_branch
      %373 = sbr.rel (0) target = $region73
    $region72: #{_fused_lstm_seq.1} parent=1 // pred_region
      _
    $region73: #{_fused_lstm_seq.1} parent=1 // pred_fallthru
      _
    // Predicated region
    $region74: #{_fused_lstm_seq.1} parent=1 // pred_check
      _
    $region75: #{_fused_lstm_seq.1} parent=1 // pred_check_branch
      %375 = sbr.rel (0) target = $region77
    $region76: #{_fused_lstm_seq.1} parent=1 // pred_region
      _
    $region77: #{_fused_lstm_seq.1} parent=1 // pred_fallthru
      _
    // Predicated region
    $region78: #{_fused_lstm_seq.1} parent=1 // pred_check
      _
    $region79: #{_fused_lstm_seq.1} parent=1 // pred_check_branch
      %377 = sbr.rel (0) target = $region81
    $region80: #{_fused_lstm_seq.1} parent=1 // pred_region
      _
    $region81: #{_fused_lstm_seq.1} parent=1 // pred_fallthru
      _
    %378 = vsyncpa [#allocation8], 1
    %379 = vsyncpa [#allocation10], 1

</llo_original>
